<compile_context>
chip_gen: v6e
topology: v6e:2x2x1
jax: 0.10.0
libtpu: 0.0.40
codegen_flags: <defaults>
</compile_context>

<pallas_src>
import jax
import jax.numpy as jnp
from jax.experimental import pallas as pl
from jax.experimental.pallas import tpu as pltpu


def _chomp_copy_kernel(x_ref, o_ref):
    # Identical (row_tile, lane_tile) VMEM blocks over the kept region -> copy.
    o_ref[...] = x_ref[...]


def _round_up(x: int, m: int) -> int:
    return ((x + m - 1) // m) * m


def _round_down(x: int, m: int) -> int:
    return (x // m) * m


# Minimum sublane multiple by element width (f32: 8, bf16: 16, int8/fp8: 32).
_SUBLANE_MULTIPLE = {4: 8, 2: 16, 1: 32}
# Dtype-scaled lane-tile cap when lanes must be tiled (same bytes per tile).
_LANE_CAP = {4: 2048, 2: 4096, 1: 8192}


def _vmem_budget():
    """(per-tile byte budget, vmem_limit_bytes) sized from physical VMEM."""
    try:
        cap = int(pltpu.get_tpu_info().vmem_capacity_bytes)
    except Exception:
        cap = 64 << 20  # assume the smallest physical VMEM (v7x per-TC)
    # 4 live buffers (2x input, 2x output) of `per_tile` each, plus headroom.
    per_tile = min(cap // 8, 8 << 20)
    vmem_limit = min((cap * 3) // 4, 96 << 20)
    return per_tile, vmem_limit


def chomp1d(x: jax.Array, chomp_size: int) -> jax.Array:
    """Equivalent of Chomp1d(chomp_size)(x) for x of shape (N, C, L)."""
    n, c, l = x.shape
    # Parity note: PyTorch's x[:, :, :-0] is an empty tensor; we require a
    # positive, in-range chomp (the only case a TCN actually uses).
    assert 0 < chomp_size < l, "require 0 < chomp_size < L"
    l_out = l - chomp_size

    rows = n * c
    x2 = x.reshape(rows, l)  # collapse (N, C) -> contiguous rows (free)

    itemsize = jnp.dtype(x.dtype).itemsize
    sub = _SUBLANE_MULTIPLE.get(itemsize, 8)
    lane_cap = _LANE_CAP.get(itemsize, 2048)
    per_tile_budget, vmem_limit = _vmem_budget()

    # --- Lane tile first: prefer whole kept rows if they fit the budget. ---
    l_pad = _round_up(l_out, 128)
    if sub * l_pad * itemsize <= per_tile_budget:
        lane_tile = l_pad  # whole-row blocks -> 1-D grid over rows
    else:
        lane_tile = _round_down(per_tile_budget // (sub * itemsize), 128)
        lane_tile = max(128, min(lane_cap, lane_tile))

    # --- Row tile from the remaining per-tile budget. ---
    row_tile = _round_down(per_tile_budget // (lane_tile * itemsize), sub)
    row_tile = max(sub, min(row_tile, _round_up(rows, sub)))

    # --- Megacore (v7x) load balance: avoid a single-block grid. ---
    if (pl.cdiv(rows, row_tile) == 1 and pl.cdiv(l_out, lane_tile) == 1
            and rows > sub):
        row_tile = _round_up(-(-rows // 2), sub)  # ceil(rows/2) rounded to sub

    num_row_blocks = pl.cdiv(rows, row_tile)
    num_lane_blocks = pl.cdiv(l_out, lane_tile)
    block = (row_tile, lane_tile)

    if num_lane_blocks == 1:
        # 1-D grid over rows: contiguous whole-row writes, fewest grid steps.
        grid = (num_row_blocks,)
        idx_map = lambda i: (i, 0)
        semantics = ("parallel",)
    else:
        grid = (num_row_blocks, num_lane_blocks)
        idx_map = lambda i, j: (i, j)
        semantics = ("parallel", "parallel")

    out2 = pl.pallas_call(
        _chomp_copy_kernel,
        out_shape=jax.ShapeDtypeStruct((rows, l_out), x.dtype),
        grid_spec=pltpu.PrefetchScalarGridSpec(
            num_scalar_prefetch=0,
            grid=grid,
            # Same block shape + index map over L_out for both sides: the
            # chomped tail is never DMA'd from HBM.
            in_specs=[pl.BlockSpec(block, idx_map)],
            out_specs=pl.BlockSpec(block, idx_map),
        ),
        compiler_params=pltpu.CompilerParams(
            dimension_semantics=semantics,
            vmem_limit_bytes=vmem_limit,
        ),
    )(x2)

    return out2.reshape(n, c, l_out)


if __name__ == "__main__":
    key = jax.random.PRNGKey(0)

    # Small shapes consistent with the TCN module: (batch, channels, length).
    N, C, L = 2, 4, 16
    chomp_size = 3
    x = jax.random.normal(key, (N, C, L), dtype=jnp.float32)

    y = chomp1d(x, chomp_size)
    jax.block_until_ready(y)

    y_ref = x[:, :, :-chomp_size]  # matches torch's x[:, :, :-chomp_size]
    assert y.shape == (N, C, L - chomp_size), y.shape
    assert jnp.array_equal(y, y_ref), "Pallas chomp output mismatch (f32)"

    # Second check: bf16, longer (non-multiple-of-128) length.
    x_b = jax.random.normal(jax.random.PRNGKey(1), (2, 4, 300), dtype=jnp.bfloat16)
    y_b = chomp1d(x_b, 7)
    jax.block_until_ready(y_b)
    assert jnp.array_equal(y_b, x_b[:, :, :-7]), "Pallas chomp output mismatch (bf16)"

    print("KERNEL_OK")
</pallas_src>

<mosaic_0001>
module attributes {stable_mosaic.version = 11 : i64} {
  func.func @_chomp_copy_kernel(%arg0: i32, %arg1: memref<8x128xf32, #tpu.memory_space<vmem>>, %arg2: memref<8x128xf32, #tpu.memory_space<vmem>>) attributes {dimension_semantics = [#tpu.dimension_semantics<parallel>], iteration_bounds = array<i64: 1>, scalar_prefetch = 0 : i64, scratch_operands = 0 : i64, tpu.core_type = #tpu.core_type<tc>, window_params = [{transform_indices = @transform_0, window_bounds = array<i64: 8, 128>}, {transform_indices = @transform_1, window_bounds = array<i64: 8, 128>}]} {
    %c0 = arith.constant 0 : index
    %c0_0 = arith.constant 0 : index
    %0 = vector.load %arg1[%c0, %c0_0] : memref<8x128xf32, #tpu.memory_space<vmem>>, vector<8x128xf32>
    %c0_1 = arith.constant 0 : index
    %c0_2 = arith.constant 0 : index
    %1 = vector.load %arg2[%c0_1, %c0_2] : memref<8x128xf32, #tpu.memory_space<vmem>>, vector<8x128xf32>
    tpu.vector_store %arg2[%c0_1, %c0_2], %0 {strides = array<i32>} : memref<8x128xf32, #tpu.memory_space<vmem>>, vector<8x128xf32>,
    return
  }
  func.func @transform_0(%arg0: i32) -> (i32, i32) {
    %c0_i32 = arith.constant 0 : i32
    %c0_i32_0 = arith.constant 0 : i32
    return %arg0, %c0_i32 : i32, i32
  }
  func.func @transform_1(%arg0: i32) -> (i32, i32) {
    %c0_i32 = arith.constant 0 : i32
    %c0_i32_0 = arith.constant 0 : i32
    return %arg0, %c0_i32 : i32, i32
  }
}

</mosaic_0001>

<llo_original>
// kernel: tpu_custom_call.1
$region0: #{tpu_custom_call.1}
  #allocation0 [shape = 'u32[]', space=smem, size = 0x4, offset = 0x4, fixed_abs, tag = 'smem constant byte address 0x4 - core index']
  #allocation1 [shape = 'u32[144,128]{1,0:T(1,128)}', space=vmem, size = 0x12000, scoped, tag = 'internal scratch']
  %s0 = inlined_call_operand.hbm [shape: f32[8,16], index: 0, kind: input, shape index: {}]
  %s1 = inlined_call_operand.hbm [shape: f32[8,13], index: 1, kind: output, shape index: {}]
  %s2 = sld [smem:[#allocation0]]
  $region18: #{tpu_custom_call.1} parent=0
    _
  %s4 = ssub.s32 1, %s2
  %s5 = scalar_select 0, %s4, %s2
  $region1: #{tpu_custom_call.1} parent=0
    #allocation2 [shape = 'u8[4096]{0}', space=vmem, size = 0x1000, scoped, tag = 'input window, operand 0, single buffered']
    #allocation3 [shape = 's32[1]{0}', space=sflag, size = 0x4, scoped, tag = 'scoped memory for tpu_custom_call.1']
    #allocation4 [shape = 's32[1]{0}', space=sflag, size = 0x4, scoped, tag = 'scoped memory for tpu_custom_call.1']
    #allocation5 [shape = 'u8[4096]{0}', space=vmem, size = 0x1000, scoped, tag = 'output window, operand 0, single buffered']
    %6 = vsyncpa [#allocation3], 0
    %7 = vsyncpa [#allocation4], 0
    // Predicated region
    $region2: #{tpu_custom_call.1} parent=1 // pred_check
      _
    $region3: #{tpu_custom_call.1} parent=1 // pred_check_branch
      %9 = sbr.rel (0) target = $region5
    $region4: #{tpu_custom_call.1} parent=1 // pred_region
      %s11 = ssub.s32 128, 128
      %12 = vsyncadd [#allocation3], %s11
      %s14 = sshll.u32 [#allocation2], 4
      %s15 = int_to_ptr.vmem [resolvable:$true] %s14
      %17 = dma.hbm_to_vmem [thread:$0]  %s0, 128, %s15, [#allocation3]
    $region5: #{tpu_custom_call.1} parent=1 // pred_fallthru
      _
    // Predicated region
    $region6: #{tpu_custom_call.1} parent=1 // pred_check
      _
    $region7: #{tpu_custom_call.1} parent=1 // pred_check_branch
      %19 = sbr.rel (0) target = $region9
    $region8: #{tpu_custom_call.1} parent=1 // pred_region
      %20 = dma.done [#allocation3], 128
    $region9: #{tpu_custom_call.1} parent=1 // pred_fallthru
      _
    %v21 = vld [vmem:[#allocation2] sm:$0xff]
    %22 = vst [vmem:[#allocation5] sm:$0xff] %v21
    // Predicated region
    $region10: #{tpu_custom_call.1} parent=1 // pred_check
      _
    $region11: #{tpu_custom_call.1} parent=1 // pred_check_branch
      %24 = sbr.rel (0) target = $region13
    $region12: #{tpu_custom_call.1} parent=1 // pred_region
      %s26 = ssub.s32 128, 128
      %27 = vsyncadd [#allocation4], %s26
      %s29 = sshll.u32 [#allocation5], 4
      %s30 = int_to_ptr.vmem [resolvable:$true] %s29
      %32 = dma.vmem_to_hbm [thread:$0]  %s30, 128, %s1, [#allocation4]
    $region13: #{tpu_custom_call.1} parent=1 // pred_fallthru
      _
    // Predicated region
    $region14: #{tpu_custom_call.1} parent=1 // pred_check
      _
    $region15: #{tpu_custom_call.1} parent=1 // pred_check_branch
      %34 = sbr.rel (0) target = $region17
    $region16: #{tpu_custom_call.1} parent=1 // pred_region
      %35 = dma.done [#allocation4], 128
    $region17: #{tpu_custom_call.1} parent=1 // pred_fallthru
      _
    %36 = vsyncpa [#allocation3], 1
    %37 = vsyncpa [#allocation4], 1

</llo_original>
